<compile_context>
chip_gen: v7x
topology: tpu7x:2x2x1
jax: 0.10.0
libtpu: 0.0.40
codegen_flags: <defaults>
</compile_context>

<pallas_src>
import functools

import jax
import jax.numpy as jnp
from jax.experimental import pallas as pl
from jax.experimental.pallas import tpu as pltpu


def _round_up(x, m):
    return (x + m - 1) // m * m


# ---------------------------------------------------------------------------
# Fast path: all stage weights resident in VMEM, stage loop unrolled in-kernel
# ---------------------------------------------------------------------------
def _make_block_kernel(n_stages):
    def kernel(x_ref, w_ref, b_ref, o_ref):
        # head
        acc = (
            jnp.dot(x_ref[...], w_ref[0], preferred_element_type=jnp.float32)
            + b_ref[0]
        )
        # residual ReLU blocks (static unroll; each stage uses a static index
        # into the resident weight stack -> no dynamic-slice overhead)
        for l in range(1, n_stages - 1):
            y = (
                jnp.dot(acc, w_ref[l], preferred_element_type=jnp.float32)
                + b_ref[l]
            )
            acc = acc + jnp.maximum(y, 0.0)
        # tail
        o_ref[...] = (
            jnp.dot(acc, w_ref[n_stages - 1], preferred_element_type=jnp.float32)
            + b_ref[n_stages - 1]
        ).astype(o_ref.dtype)

    return kernel


# ---------------------------------------------------------------------------
# Fallback path: grid over (batch_tiles, stages), weights pipelined per stage
# ---------------------------------------------------------------------------
def _stage_pipeline_kernel(x_ref, w_ref, b_ref, o_ref, acc_ref):
    l = pl.program_id(1)
    last = pl.num_programs(1) - 1

    w = w_ref[0]  # (F, F)
    b = b_ref[0]  # (1, F) -> broadcasts over rows

    @pl.when(l == 0)
    def _head():
        acc_ref[...] = (
            jnp.dot(x_ref[...], w, preferred_element_type=jnp.float32) + b
        )

    @pl.when(jnp.logical_and(l > 0, l < last))
    def _res_block():
        a = acc_ref[...]
        y = jnp.dot(a, w, preferred_element_type=jnp.float32) + b
        acc_ref[...] = a + jnp.maximum(y, 0.0)

    @pl.when(l == last)
    def _tail():
        o_ref[...] = (
            jnp.dot(acc_ref[...], w, preferred_element_type=jnp.float32) + b
        ).astype(o_ref.dtype)


# ---------------------------------------------------------------------------
# Wrapper: pad to lane-dense shapes, stack stages, single pallas_call
# ---------------------------------------------------------------------------
def resmlp_forward(x, params, *, tm=128, stage_pipeline=None):
    """stage_pipeline: None = auto, False = force fused/resident weights,
    True = force the (batch, stage) pipelined grid."""
    head_w, head_b = params["head_w"], params["head_b"]
    tail_w, tail_b = params["tail_w"], params["tail_b"]
    layers = params["layers"]

    batch, in_dim = x.shape
    hidden0 = head_w.shape[1]
    out_dim = tail_w.shape[1]

    # Common lane-dense feature width (multiple of 128) for all stages.
    feat_dims = [in_dim, hidden0, out_dim] + [w.shape[1] for w, _ in layers]
    F = _round_up(max(feat_dims), 128)

    # Batch padded to a sublane multiple; tile it for pipelining / megacore.
    B = _round_up(batch, 8)
    TM = min(tm, B)
    B = _round_up(B, TM)

    def pad_wb(w, b):
        wp = jnp.zeros((F, F), w.dtype).at[: w.shape[0], : w.shape[1]].set(w)
        bp = jnp.zeros((1, F), b.dtype).at[:, : b.shape[-1]].set(b.reshape(1, -1))
        return wp, bp

    stages = (
        [pad_wb(head_w, head_b)]
        + [pad_wb(w, b) for w, b in layers]
        + [pad_wb(tail_w, tail_b)]
    )
    W = jnp.stack([w for w, _ in stages])   # (S, F, F)
    Bi = jnp.stack([b for _, b in stages])  # (S, 1, F)
    n_stages = W.shape[0]

    xp = jnp.zeros((B, F), x.dtype).at[:batch, :in_dim].set(x)

    itemsize = jnp.dtype(x.dtype).itemsize
    cost = pl.CostEstimate(
        flops=2 * B * F * F * n_stages,
        transcendentals=0,
        bytes_accessed=(W.size + Bi.size + 2 * B * F) * itemsize,
    )

    # Heuristic: keep the full weight stack resident in VMEM when it fits
    # comfortably (double-buffered inputs/outputs + f32 activation headroom).
    if stage_pipeline is None:
        resident_bytes = (
            2 * (n_stages * F * F + n_stages * F + 2 * TM * F) * itemsize
            + 4 * TM * F * 4
        )
        stage_pipeline = resident_bytes > (48 << 20)

    if not stage_pipeline:
        # --- fast path: single grid axis over batch tiles ------------------
        out = pl.pallas_call(
            _make_block_kernel(n_stages),
            out_shape=jax.ShapeDtypeStruct((B, F), x.dtype),
            grid_spec=pltpu.PrefetchScalarGridSpec(
                num_scalar_prefetch=0,
                grid=(B // TM,),
                in_specs=[
                    pl.BlockSpec((TM, F), lambda bt: (bt, 0)),            # acts
                    pl.BlockSpec((n_stages, F, F), lambda bt: (0, 0, 0)),  # all W
                    pl.BlockSpec((n_stages, 1, F), lambda bt: (0, 0, 0)),  # all b
                ],
                out_specs=pl.BlockSpec((TM, F), lambda bt: (bt, 0)),
            ),
            compiler_params=pltpu.CompilerParams(
                dimension_semantics=("parallel",),
                vmem_limit_bytes=96 << 20,
            ),
            cost_estimate=cost,
        )(xp, W, Bi)
    else:
        # --- fallback: pipeline weights stage by stage ----------------------
        out = pl.pallas_call(
            _stage_pipeline_kernel,
            out_shape=jax.ShapeDtypeStruct((B, F), x.dtype),
            grid_spec=pltpu.PrefetchScalarGridSpec(
                num_scalar_prefetch=0,
                grid=(B // TM, n_stages),
                in_specs=[
                    pl.BlockSpec((TM, F), lambda bt, l: (bt, 0)),      # acts
                    pl.BlockSpec((1, F, F), lambda bt, l: (l, 0, 0)),  # stage W
                    pl.BlockSpec((1, 1, F), lambda bt, l: (l, 0, 0)),  # stage b
                ],
                out_specs=pl.BlockSpec((TM, F), lambda bt, l: (bt, 0)),
                scratch_shapes=[pltpu.VMEM((TM, F), jnp.float32)],
            ),
            compiler_params=pltpu.CompilerParams(
                dimension_semantics=("parallel", "arbitrary"),
            ),
            cost_estimate=cost,
        )(xp, W, Bi)

    return out[:batch, :out_dim]


# ---------------------------------------------------------------------------
# Parameter init (mimics nn.Linear's U(-1/sqrt(fan_in), 1/sqrt(fan_in)))
# Weights stored as [in_features, out_features]; biases as [1, out_features].
# ---------------------------------------------------------------------------
def init_params(key, in_dim, out_dim, hidden, dtype=jnp.float32):
    def linear_init(k, fan_in, fan_out):
        kw, kb = jax.random.split(k)
        bound = 1.0 / jnp.sqrt(jnp.float32(fan_in))
        w = jax.random.uniform(kw, (fan_in, fan_out), dtype, -bound, bound)
        b = jax.random.uniform(kb, (1, fan_out), dtype, -bound, bound)
        return w, b

    keys = jax.random.split(key, 2 + (len(hidden) - 1))
    head_w, head_b = linear_init(keys[0], in_dim, hidden[0])
    layers = []
    for i in range(len(hidden) - 1):
        layers.append(linear_init(keys[1 + i], hidden[i], hidden[i + 1]))
    tail_w, tail_b = linear_init(keys[-1], hidden[-1], out_dim)
    return {
        "head_w": head_w,
        "head_b": head_b,
        "layers": layers,
        "tail_w": tail_w,
        "tail_b": tail_b,
    }


def resmlp_reference(x, params):
    """Pure-JAX reference for correctness checking."""
    y = x @ params["head_w"] + params["head_b"]
    for w, b in params["layers"]:
        y = y + jnp.maximum(y @ w + b, 0.0)
    return y @ params["tail_w"] + params["tail_b"]


if __name__ == "__main__":
    key = jax.random.PRNGKey(0)
    k_x, k_p = jax.random.split(key)

    batch, in_dim, out_dim = 256, 16, 8
    hidden = [32, 32, 32]  # equal dims required by the residual add

    x = jax.random.normal(k_x, (batch, in_dim), jnp.float32)
    params = init_params(k_p, in_dim, out_dim, hidden)

    ref = resmlp_reference(x, params)

    # Fast path (weights resident in VMEM, unrolled stages).
    out_fast = jax.block_until_ready(resmlp_forward(x, params))
    assert out_fast.shape == (batch, out_dim)
    assert jnp.allclose(out_fast, ref, atol=1e-4, rtol=1e-4)

    # Fallback path (stage-pipelined grid) exercised explicitly for coverage.
    out_pipe = jax.block_until_ready(
        resmlp_forward(x, params, stage_pipeline=True)
    )
    assert out_pipe.shape == (batch, out_dim)
    assert jnp.allclose(out_pipe, ref, atol=1e-4, rtol=1e-4)

    print("KERNEL_OK")
</pallas_src>

<mosaic_0001>
module attributes {stable_mosaic.version = 11 : i64} {
  func.func @kernel(%arg0: i32, %arg1: memref<128x128xf32, #tpu.memory_space<vmem>>, %arg2: memref<4x128x128xf32, #tpu.memory_space<vmem>>, %arg3: memref<4x1x128xf32, #tpu.memory_space<vmem>>, %arg4: memref<128x128xf32, #tpu.memory_space<vmem>>) attributes {dimension_semantics = [#tpu.dimension_semantics<parallel>], iteration_bounds = array<i64: 2>, scalar_prefetch = 0 : i64, scratch_operands = 0 : i64, tpu.core_type = #tpu.core_type<tc>, window_params = [{transform_indices = @transform_0, window_bounds = array<i64: 128, 128>}, {pipeline_mode = #tpu.pipeline_mode<synchronous>, transform_indices = @transform_1, window_bounds = array<i64: 4, 128, 128>}, {pipeline_mode = #tpu.pipeline_mode<synchronous>, transform_indices = @transform_2, window_bounds = array<i64: 4, 1, 128>}, {transform_indices = @transform_3, window_bounds = array<i64: 128, 128>}]} {
    %c0 = arith.constant 0 : index
    %c0_0 = arith.constant 0 : index
    %0 = vector.load %arg1[%c0, %c0_0] : memref<128x128xf32, #tpu.memory_space<vmem>>, vector<128x128xf32>
    %c0_1 = arith.constant 0 : index
    %c0_2 = arith.constant 0 : index
    %c0_3 = arith.constant 0 : index
    %1 = vector.load %arg2[%c0_1, %c0_2, %c0_3] : memref<4x128x128xf32, #tpu.memory_space<vmem>>, vector<1x128x128xf32>
    %2 = vector.shape_cast %1 : vector<1x128x128xf32> to vector<128x128xf32>
    %cst = arith.constant dense<0.000000e+00> : vector<128x128xf32>
    %3 = tpu.matmul %0, %2, %cst {dimension_numbers = #tpu.dot_dimension_numbers<[1], [0], [0], [1], [0, 0, 1, 1], [], []>} : vector<128x128xf32>, vector<128x128xf32>, vector<128x128xf32> -> vector<128x128xf32>
    %c0_4 = arith.constant 0 : index
    %c0_5 = arith.constant 0 : index
    %c0_6 = arith.constant 0 : index
    %4 = vector.load %arg3[%c0_4, %c0_5, %c0_6] : memref<4x1x128xf32, #tpu.memory_space<vmem>>, vector<1x1x128xf32>
    %5 = vector.shape_cast %4 : vector<1x1x128xf32> to vector<1x128xf32>
    %6 = vector.broadcast %5 : vector<1x128xf32> to vector<128x128xf32>
    %7 = arith.addf %3, %6 : vector<128x128xf32>
    %c1 = arith.constant 1 : index
    %c0_7 = arith.constant 0 : index
    %c0_8 = arith.constant 0 : index
    %8 = vector.load %arg2[%c1, %c0_7, %c0_8] : memref<4x128x128xf32, #tpu.memory_space<vmem>>, vector<1x128x128xf32>
    %9 = vector.shape_cast %8 : vector<1x128x128xf32> to vector<128x128xf32>
    %cst_9 = arith.constant dense<0.000000e+00> : vector<128x128xf32>
    %10 = tpu.matmul %7, %9, %cst_9 {dimension_numbers = #tpu.dot_dimension_numbers<[1], [0], [0], [1], [0, 0, 1, 1], [], []>} : vector<128x128xf32>, vector<128x128xf32>, vector<128x128xf32> -> vector<128x128xf32>
    %c1_10 = arith.constant 1 : index
    %c0_11 = arith.constant 0 : index
    %c0_12 = arith.constant 0 : index
    %11 = vector.load %arg3[%c1_10, %c0_11, %c0_12] : memref<4x1x128xf32, #tpu.memory_space<vmem>>, vector<1x1x128xf32>
    %12 = vector.shape_cast %11 : vector<1x1x128xf32> to vector<1x128xf32>
    %13 = vector.broadcast %12 : vector<1x128xf32> to vector<128x128xf32>
    %14 = arith.addf %10, %13 : vector<128x128xf32>
    %cst_13 = arith.constant 0.000000e+00 : f32
    %15 = vector.broadcast %cst_13 : f32 to vector<128x128xf32>
    %16 = arith.maximumf %14, %15 : vector<128x128xf32>
    %17 = arith.addf %7, %16 : vector<128x128xf32>
    %c2 = arith.constant 2 : index
    %c0_14 = arith.constant 0 : index
    %c0_15 = arith.constant 0 : index
    %18 = vector.load %arg2[%c2, %c0_14, %c0_15] : memref<4x128x128xf32, #tpu.memory_space<vmem>>, vector<1x128x128xf32>
    %19 = vector.shape_cast %18 : vector<1x128x128xf32> to vector<128x128xf32>
    %cst_16 = arith.constant dense<0.000000e+00> : vector<128x128xf32>
    %20 = tpu.matmul %17, %19, %cst_16 {dimension_numbers = #tpu.dot_dimension_numbers<[1], [0], [0], [1], [0, 0, 1, 1], [], []>} : vector<128x128xf32>, vector<128x128xf32>, vector<128x128xf32> -> vector<128x128xf32>
    %c2_17 = arith.constant 2 : index
    %c0_18 = arith.constant 0 : index
    %c0_19 = arith.constant 0 : index
    %21 = vector.load %arg3[%c2_17, %c0_18, %c0_19] : memref<4x1x128xf32, #tpu.memory_space<vmem>>, vector<1x1x128xf32>
    %22 = vector.shape_cast %21 : vector<1x1x128xf32> to vector<1x128xf32>
    %23 = vector.broadcast %22 : vector<1x128xf32> to vector<128x128xf32>
    %24 = arith.addf %20, %23 : vector<128x128xf32>
    %cst_20 = arith.constant 0.000000e+00 : f32
    %25 = vector.broadcast %cst_20 : f32 to vector<128x128xf32>
    %26 = arith.maximumf %24, %25 : vector<128x128xf32>
    %27 = arith.addf %17, %26 : vector<128x128xf32>
    %c3 = arith.constant 3 : index
    %c0_21 = arith.constant 0 : index
    %c0_22 = arith.constant 0 : index
    %28 = vector.load %arg2[%c3, %c0_21, %c0_22] : memref<4x128x128xf32, #tpu.memory_space<vmem>>, vector<1x128x128xf32>
    %29 = vector.shape_cast %28 : vector<1x128x128xf32> to vector<128x128xf32>
    %cst_23 = arith.constant dense<0.000000e+00> : vector<128x128xf32>
    %30 = tpu.matmul %27, %29, %cst_23 {dimension_numbers = #tpu.dot_dimension_numbers<[1], [0], [0], [1], [0, 0, 1, 1], [], []>} : vector<128x128xf32>, vector<128x128xf32>, vector<128x128xf32> -> vector<128x128xf32>
    %c3_24 = arith.constant 3 : index
    %c0_25 = arith.constant 0 : index
    %c0_26 = arith.constant 0 : index
    %31 = vector.load %arg3[%c3_24, %c0_25, %c0_26] : memref<4x1x128xf32, #tpu.memory_space<vmem>>, vector<1x1x128xf32>
    %32 = vector.shape_cast %31 : vector<1x1x128xf32> to vector<1x128xf32>
    %33 = vector.broadcast %32 : vector<1x128xf32> to vector<128x128xf32>
    %34 = arith.addf %30, %33 : vector<128x128xf32>
    %c0_27 = arith.constant 0 : index
    %c0_28 = arith.constant 0 : index
    %35 = vector.load %arg4[%c0_27, %c0_28] : memref<128x128xf32, #tpu.memory_space<vmem>>, vector<128x128xf32>
    tpu.vector_store %arg4[%c0_27, %c0_28], %34 {strides = array<i32>} : memref<128x128xf32, #tpu.memory_space<vmem>>, vector<128x128xf32>,
    return
  }
  func.func @transform_0(%arg0: i32) -> (i32, i32) {
    %c0_i32 = arith.constant 0 : i32
    %c0_i32_0 = arith.constant 0 : i32
    return %arg0, %c0_i32 : i32, i32
  }
  func.func @transform_1(%arg0: i32) -> (i32, i32, i32) {
    %c0_i32 = arith.constant 0 : i32
    %c0_i32_0 = arith.constant 0 : i32
    %c0_i32_1 = arith.constant 0 : i32
    %c0_i32_2 = arith.constant 0 : i32
    return %c0_i32, %c0_i32_0, %c0_i32_1 : i32, i32, i32
  }
  func.func @transform_2(%arg0: i32) -> (i32, i32, i32) {
    %c0_i32 = arith.constant 0 : i32
    %c0_i32_0 = arith.constant 0 : i32
    %c0_i32_1 = arith.constant 0 : i32
    %c0_i32_2 = arith.constant 0 : i32
    return %c0_i32, %c0_i32_0, %c0_i32_1 : i32, i32, i32
  }
  func.func @transform_3(%arg0: i32) -> (i32, i32) {
    %c0_i32 = arith.constant 0 : i32
    %c0_i32_0 = arith.constant 0 : i32
    return %arg0, %c0_i32 : i32, i32
  }
}

</mosaic_0001>

<llo_original>
// kernel: tpu_custom_call.1
$region0: #{tpu_custom_call.1}
  #allocation0 [shape = 'u32[]', space=smem, size = 0x4, offset = 0x4, fixed_abs, tag = 'smem constant byte address 0x4 - core index']
  #allocation1 [shape = 'u32[144,128]{1,0:T(1,128)}', space=vmem, size = 0x12000, scoped, tag = 'internal scratch']
  %s0 = inlined_call_operand.hbm [shape: f32[256,128], index: 0, kind: input, shape index: {}]
  %s1 = inlined_call_operand.hbm [shape: f32[4,128,128], index: 1, kind: input, shape index: {}]
  %s2 = inlined_call_operand.hbm [shape: f32[4,1,128], index: 2, kind: input, shape index: {}]
  %s3 = inlined_call_operand.hbm [shape: f32[256,128], index: 3, kind: output, shape index: {}]
  %s4 = sld [smem:[#allocation0]]
  $region57: #{tpu_custom_call.1} parent=0
    _
  %s6 = ssub.s32 1, %s4
  %s7 = scalar_select 0, %s6, %s4
  $region1: #{tpu_custom_call.1} parent=0
    #allocation2 [shape = 'u8[131072]{0}', space=vmem, size = 0x20000, scoped, tag = 'input window, operand 0']
    #allocation3 [shape = 's32[2]{0}', space=sflag, size = 0x8, scoped, tag = 'scoped memory for tpu_custom_call.1']
    #allocation4 [shape = 's32[2]{0}', space=sflag, size = 0x8, scoped, tag = 'scoped memory for tpu_custom_call.1']
    #allocation5 [shape = 'u8[262144]{0}', space=vmem, size = 0x40000, scoped, tag = 'input window, operand 1, single buffered']
    #allocation6 [shape = 's32[1]{0}', space=sflag, size = 0x4, scoped, tag = 'scoped memory for tpu_custom_call.1']
    #allocation7 [shape = 'u8[2048]{0}', space=vmem, size = 0x800, scoped, tag = 'input window, operand 2, single buffered']
    #allocation8 [shape = 'u8[131072]{0}', space=vmem, size = 0x20000, scoped, tag = 'output window, operand 0']
    %8 = vsyncpa [#allocation3], 0
    %s9 = scalar_lea.sflag [#allocation3], 1
    %10 = vsyncpa %s9, 0
    %11 = vsyncpa [#allocation6], 0
    %12 = vsyncpa [#allocation4], 0
    %s13 = scalar_lea.sflag [#allocation4], 1
    %14 = vsyncpa %s13, 0
    loop: start=0, step=1, limit=4
    $region2: #{tpu_custom_call.1} parent=1 // loop_pre_header
      _
    $region3: #{tpu_custom_call.1} parent=1 // loop_header
      %s16 = sphi 0, %s20
      %p17 = scmp.ge.s32.totalorder %s16, 4
      %s26 = sphi 0, %s28
      %s29 = sphi 0, %s26
      %s30 = sphi 0, %s29
      %s46 = sphi 0, %s30
      %s50 = sphi 0, %s50
      %s52 = sphi 0, %s50
      %s53 = sphi 0, %s52
      %s67 = sphi 0, %s53
      %s71 = sphi 0, %s71
      %s73 = sphi 0, %s71
      %s74 = sphi 0, %s73
      %s88 = sphi 0, %s74
      %s94 = sphi 0, %s96
      %s97 = sphi 0, %s94
      %s98 = sphi 0, %s97
      %s114 = sphi 0, %s98
    $region4: #{tpu_custom_call.1} parent=1 // loop_header_branch
      %19 = sbr.rel (%p17) target = $region8
    $region5: #{tpu_custom_call.1} parent=1 // loop_body
      %s21 = ssub.s32 %s16, 1
      %s22 = ssub.s32 %s16, 2
      %s23 = sadd.s32 %s16, 1
      %s24 = ssub.s32 %s16, %s23
      %p25 = scmp.eq.s32.totalorder %s24, 0
      %s27 = sadd.s32 %s26, 1
      %s28 = scalar_select %p25, %s26, %s27
      %p31 = pneg %p25
      %p32 = scmp.eq.s32.totalorder %s16, 1
      %p33 = por %p31, %p32
      %p34 = scmp.ne.s32.totalorder %s26, %s29
      %p35 = scmp.eq.s32.totalorder %s16, 0
      %p36 = por %p34, %p35
      %p37 = scmp.ne.s32.totalorder %s26, %s29
      %p38 = scmp.eq.s32.totalorder %s21, 1
      %p39 = por %p37, %p38
      %p40 = scmp.ne.s32.totalorder %s29, %s30
      %p41 = scmp.eq.s32.totalorder %s21, 0
      %p42 = por %p40, %p41
      %p43 = scmp.ne.s32.totalorder %s29, %s30
      %p44 = scmp.eq.s32.totalorder %s22, 1
      %p45 = por %p43, %p44
      %p47 = scmp.ne.s32.totalorder %s30, %s46
      %p48 = scmp.eq.s32.totalorder %s22, 0
      %p49 = por %p47, %p48
      %s51 = sadd.s32 %s50, 1
      %p54 = scmp.eq.s32.totalorder %s16, 1
      %p55 = scmp.ne.s32.totalorder %s50, %s52
      %p56 = scmp.eq.s32.totalorder %s16, 0
      %p57 = por %p55, %p56
      %p58 = scmp.ne.s32.totalorder %s50, %s52
      %p59 = scmp.eq.s32.totalorder %s21, 1
      %p60 = por %p58, %p59
      %p61 = scmp.ne.s32.totalorder %s52, %s53
      %p62 = scmp.eq.s32.totalorder %s21, 0
      %p63 = por %p61, %p62
      %p64 = scmp.ne.s32.totalorder %s52, %s53
      %p65 = scmp.eq.s32.totalorder %s22, 1
      %p66 = por %p64, %p65
      %p68 = scmp.ne.s32.totalorder %s53, %s67
      %p69 = scmp.eq.s32.totalorder %s22, 0
      %p70 = por %p68, %p69
      %s72 = sadd.s32 %s71, 1
      %p75 = scmp.eq.s32.totalorder %s16, 1
      %p76 = scmp.ne.s32.totalorder %s71, %s73
      %p77 = scmp.eq.s32.totalorder %s16, 0
      %p78 = por %p76, %p77
      %p79 = scmp.ne.s32.totalorder %s71, %s73
      %p80 = scmp.eq.s32.totalorder %s21, 1
      %p81 = por %p79, %p80
      %p82 = scmp.ne.s32.totalorder %s73, %s74
      %p83 = scmp.eq.s32.totalorder %s21, 0
      %p84 = por %p82, %p83
      %p85 = scmp.ne.s32.totalorder %s73, %s74
      %p86 = scmp.eq.s32.totalorder %s22, 1
      %p87 = por %p85, %p86
      %p89 = scmp.ne.s32.totalorder %s74, %s88
      %p90 = scmp.eq.s32.totalorder %s22, 0
      %p91 = por %p89, %p90
      %s92 = ssub.s32 %s16, %s23
      %p93 = scmp.eq.s32.totalorder %s92, 0
      %s95 = sadd.s32 %s94, 1
      %s96 = scalar_select %p93, %s94, %s95
      %p99 = pneg %p93
      %p100 = scmp.eq.s32.totalorder %s16, 1
      %p101 = por %p99, %p100
      %p102 = scmp.ne.s32.totalorder %s94, %s97
      %p103 = scmp.eq.s32.totalorder %s16, 0
      %p104 = por %p102, %p103
      %p105 = scmp.ne.s32.totalorder %s94, %s97
      %p106 = scmp.eq.s32.totalorder %s21, 1
      %p107 = por %p105, %p106
      %p108 = scmp.ne.s32.totalorder %s97, %s98
      %p109 = scmp.eq.s32.totalorder %s21, 0
      %p110 = por %p108, %p109
      %p111 = scmp.ne.s32.totalorder %s97, %s98
      %p112 = scmp.eq.s32.totalorder %s22, 1
      %p113 = por %p111, %p112
      %p115 = scmp.ne.s32.totalorder %s98, %s114
      %p116 = scmp.eq.s32.totalorder %s22, 0
      %p117 = por %p115, %p116
      %p118 = scmp.le.s32.totalorder 1, %s16
      %p119 = scmp.lt.s32.totalorder %s16, 3
      %p120 = pnand %p118, %p119
      %p121 = pneg %p120
      // Predicated region
      $region9: #{tpu_custom_call.1} parent=5 // pred_check
        _
      $region10: #{tpu_custom_call.1} parent=5 // pred_check_branch
        %123 = sbr.rel (%p120) target = $region12
      $region11: #{tpu_custom_call.1} parent=5 // pred_region
        %s124 = ssub.s32 %s16, 1
        // Predicated region
        $region13: #{tpu_custom_call.1} parent=11 // pred_check
          %p125 = pneg %p63
        $region14: #{tpu_custom_call.1} parent=11 // pred_check_branch
          %127 = sbr.rel (%p125) target = $region16
        $region15: #{tpu_custom_call.1} parent=11 // pred_region
          %s129 = ssub.s32 8192, 8192
          %130 = vsyncadd [#allocation6], %s129
          %s131 = sshll.u32 [#allocation5], 4
          %s132 = int_to_ptr.vmem [resolvable:$true] %s131
          %137 = dma.hbm_to_vmem [thread:$0]  %s1, 8192, %s132, [#allocation6], 128, 128, 8
        $region16: #{tpu_custom_call.1} parent=11 // pred_fallthru
          _
        // Predicated region
        $region17: #{tpu_custom_call.1} parent=11 // pred_check
          %p138 = pneg %p84
        $region18: #{tpu_custom_call.1} parent=11 // pred_check_branch
          %140 = sbr.rel (%p138) target = $region20
        $region19: #{tpu_custom_call.1} parent=11 // pred_region
          %s142 = ssub.s32 64, 64
          %143 = vsyncadd [#allocation6], %s142
          %s144 = sshll.u32 [#allocation7], 4
          %s145 = int_to_ptr.vmem [resolvable:$true] %s144
          %150 = dma.hbm_to_vmem [thread:$0]  %s2, 64, %s145, [#allocation6], 16, 16, 1
        $region20: #{tpu_custom_call.1} parent=11 // pred_fallthru
          _
      $region12: #{tpu_custom_call.1} parent=5 // pred_fallthru
        _
      %p151 = scmp.lt.s32.totalorder %s16, 2
      // Predicated region
      $region21: #{tpu_custom_call.1} parent=5 // pred_check
        %p152 = pneg %p151
      $region22: #{tpu_custom_call.1} parent=5 // pred_check_branch
        %154 = sbr.rel (%p152) target = $region24
      $region23: #{tpu_custom_call.1} parent=5 // pred_region
        // Predicated region
        $region25: #{tpu_custom_call.1} parent=23 // pred_check
          %p155 = pneg %p36
        $region26: #{tpu_custom_call.1} parent=23 // pred_check_branch
          %157 = sbr.rel (%p155) target = $region28
        $region27: #{tpu_custom_call.1} parent=23 // pred_region
          %s158 = sand.u32 %s26, 1
          %s159 = scalar_lea.sflag [#allocation3], %s158
          %s160 = sand.u32 %s26, 1
          %s161 = smul.addr %s160, 128
          %s162 = scalar_lea.vmem [#allocation2], %s161
          %s163 = smul.u32 16, %s16
          %s165 = ssub.s32 2048, 2048
          %166 = vsyncadd %s159, %s165
          %s167 = smul.addr %s163, 128
          %s168 = scalar_lea.hbm %s0, %s167
          %s169 = sshll.u32 %s162, 4
          %s170 = int_to_ptr.vmem [resolvable:$true] %s169
          %175 = dma.hbm_to_vmem [thread:$0]  %s168, 2048, %s170, %s159, 128, 128, 8
        $region28: #{tpu_custom_call.1} parent=23 // pred_fallthru
          _
      $region24: #{tpu_custom_call.1} parent=5 // pred_fallthru
        _
      %p176 = scmp.le.s32.totalorder 1, %s16
      %p177 = scmp.lt.s32.totalorder %s16, 3
      %p178 = pnand %p176, %p177
      %p179 = pneg %p178
      // Predicated region
      $region29: #{tpu_custom_call.1} parent=5 // pred_check
        _
      $region30: #{tpu_custom_call.1} parent=5 // pred_check_branch
        %181 = sbr.rel (%p178) target = $region32
      $region31: #{tpu_custom_call.1} parent=5 // pred_region
        %s182 = ssub.s32 %s16, 1
        %s183 = sand.u32 %s29, 1
        %s184 = scalar_lea.sflag [#allocation3], %s183
        %s185 = sand.u32 %s29, 1
        %s186 = smul.addr %s185, 128
        %s187 = scalar_lea.vmem [#allocation2], %s186
        // Predicated region
        $region33: #{tpu_custom_call.1} parent=31 // pred_check
          %p188 = pneg %p42
        $region34: #{tpu_custom_call.1} parent=31 // pred_check_branch
          %190 = sbr.rel (%p188) target = $region36
        $region35: #{tpu_custom_call.1} parent=31 // pred_region
          %191 = dma.done %s184, 2048
        $region36: #{tpu_custom_call.1} parent=31 // pred_fallthru
          _
        // Predicated region
        $region37: #{tpu_custom_call.1} parent=31 // pred_check
          %p192 = pneg %p63
        $region38: #{tpu_custom_call.1} parent=31 // pred_check_branch
          %194 = sbr.rel (%p192) target = $region40
        $region39: #{tpu_custom_call.1} parent=31 // pred_region
          %195 = dma.done [#allocation6], 8192
        $region40: #{tpu_custom_call.1} parent=31 // pred_fallthru
          _
        // Predicated region
        $region41: #{tpu_custom_call.1} parent=31 // pred_check
          %p196 = pneg %p84
        $region42: #{tpu_custom_call.1} parent=31 // pred_check_branch
          %198 = sbr.rel (%p196) target = $region44
        $region43: #{tpu_custom_call.1} parent=31 // pred_region
          %199 = dma.done [#allocation6], 64
        $region44: #{tpu_custom_call.1} parent=31 // pred_fallthru
          _
        %s200 = sand.u32 %s29, 1
        %s201 = scalar_lea.sflag [#allocation3], %s200
        %s202 = sand.u32 %s29, 1
        %s203 = smul.addr %s202, 128
        %s204 = scalar_lea.vmem [#allocation2], %s203
        %p205 = pneg %p42
        %p206 = pneg %p39
        %p207 = pneg %p63
        %p208 = pneg %p60
        %p209 = pneg %p84
        %p210 = pneg %p81
        %p211 = pneg %p110
        %p212 = pneg %p107
        %s213 = sand.u32 %s97, 1
        %s214 = scalar_lea.sflag [#allocation4], %s213
        %s215 = sand.u32 %s97, 1
        %s216 = smul.addr %s215, 128
        %s217 = scalar_lea.vmem [#allocation8], %s216
        %s218 = smul.u32 16, %s21
        %s219 = smul.u32 16, %s21
        %v220 = vld [vmem:[%s187] sm:$0xff]
        %v221 = vld [vmem:[%s187 + $0x8] sm:$0xff]
        %v222 = vld [vmem:[%s187 + $0x10] sm:$0xff]
        %v223 = vld [vmem:[%s187 + $0x18] sm:$0xff]
        %v224 = vld [vmem:[%s187 + $0x20] sm:$0xff]
        %v225 = vld [vmem:[%s187 + $0x28] sm:$0xff]
        %v226 = vld [vmem:[%s187 + $0x30] sm:$0xff]
        %v227 = vld [vmem:[%s187 + $0x38] sm:$0xff]
        %v228 = vld [vmem:[%s187 + $0x40] sm:$0xff]
        %v229 = vld [vmem:[%s187 + $0x48] sm:$0xff]
        %v230 = vld [vmem:[%s187 + $0x50] sm:$0xff]
        %v231 = vld [vmem:[%s187 + $0x58] sm:$0xff]
        %v232 = vld [vmem:[%s187 + $0x60] sm:$0xff]
        %v233 = vld [vmem:[%s187 + $0x68] sm:$0xff]
        %v234 = vld [vmem:[%s187 + $0x70] sm:$0xff]
        %v235 = vld [vmem:[%s187 + $0x78] sm:$0xff]
        %v236 = vld [vmem:[#allocation5] sm:$0xff]
        %v237 = vld [vmem:[#allocation5 + $0x8] sm:$0xff]
        %v238 = vld [vmem:[#allocation5 + $0x10] sm:$0xff]
        %v239 = vld [vmem:[#allocation5 + $0x18] sm:$0xff]
        %v240 = vld [vmem:[#allocation5 + $0x20] sm:$0xff]
        %v241 = vld [vmem:[#allocation5 + $0x28] sm:$0xff]
        %v242 = vld [vmem:[#allocation5 + $0x30] sm:$0xff]
        %v243 = vld [vmem:[#allocation5 + $0x38] sm:$0xff]
        %v244 = vld [vmem:[#allocation5 + $0x40] sm:$0xff]
        %v245 = vld [vmem:[#allocation5 + $0x48] sm:$0xff]
        %v246 = vld [vmem:[#allocation5 + $0x50] sm:$0xff]
        %v247 = vld [vmem:[#allocation5 + $0x58] sm:$0xff]
        %v248 = vld [vmem:[#allocation5 + $0x60] sm:$0xff]
        %v249 = vld [vmem:[#allocation5 + $0x68] sm:$0xff]
        %v250 = vld [vmem:[#allocation5 + $0x70] sm:$0xff]
        %v251 = vld [vmem:[#allocation5 + $0x78] sm:$0xff]
        %v252 = vld [vmem:[#allocation7] sm:$0x1]
        %v254 = vlaneseq
        %v255 = vshrl.u32 %v254, 7
        %v256 = vsub.s32 0, %v255
        %v257 = vrot.slane %v252, %v256
        %259 = vmatprep.subr.mxu0 0.0
        %260 = vmatpush1.msra.mxu0 %v236
        %261 = vmatprep.subr.mxu0 0.0
        %262 = vmatpush1.msra.mxu0 %v237
        %263 = vmatprep.subr.mxu0 0.0
        %264 = vmatpush1.msra.mxu0 %v238
        %265 = vmatprep.subr.mxu0 0.0
        %266 = vmatpush1.msra.mxu0 %v239
        %267 = vmatprep.subr.mxu0 0.0
        %268 = vmatpush1.msra.mxu0 %v240
        %269 = vmatprep.subr.mxu0 0.0
        %270 = vmatpush1.msra.mxu0 %v241
        %271 = vmatprep.subr.mxu0 0.0
        %272 = vmatpush1.msra.mxu0 %v242
        %273 = vmatprep.subr.mxu0 0.0
        %274 = vmatpush1.msra.mxu0 %v243
        %275 = vmatprep.subr.mxu0 0.0
        %276 = vmatpush1.msra.mxu0 %v244
        %277 = vmatprep.subr.mxu0 0.0
        %278 = vmatpush1.msra.mxu0 %v245
        %279 = vmatprep.subr.mxu0 0.0
        %280 = vmatpush1.msra.mxu0 %v246
        %281 = vmatprep.subr.mxu0 0.0
        %282 = vmatpush1.msra.mxu0 %v247
        %283 = vmatprep.subr.mxu0 0.0
        %284 = vmatpush1.msra.mxu0 %v248
        %285 = vmatprep.subr.mxu0 0.0
        %286 = vmatpush1.msra.mxu0 %v249
        %287 = vmatprep.subr.mxu0 0.0
        %288 = vmatpush1.msra.mxu0 %v250
        %289 = vmatprep.subr.mxu0 0.0
        %290 = vmatpush1.msra.mxu0 %v251
        %291 = vmatprep.subr.mxu0 0.0
        %292 = vmatpush1.msra.mxu0 0.0
        %293 = vmatprep.subr.mxu0 0.0
        %294 = vmatpush1.msra.mxu0 0.0
        %295 = vmatprep.subr.mxu0 0.0
        %296 = vmatpush1.msra.mxu0 0.0
        %297 = vmatprep.subr.mxu0 0.0
        %298 = vmatpush1.msra.mxu0 0.0
        %299 = vmatprep.subr.mxu0 0.0
        %300 = vmatpush1.msra.mxu0 0.0
        %301 = vmatprep.subr.mxu0 0.0
        %302 = vmatpush1.msra.mxu0 0.0
        %303 = vmatprep.subr.mxu0 0.0
        %304 = vmatpush1.msra.mxu0 0.0
        %305 = vmatprep.subr.mxu0 0.0
        %306 = vmatpush1.msra.mxu0 0.0
        %307 = vmatprep.subr.mxu0 0.0
        %308 = vmatpush1.msra.mxu0 0.0
        %309 = vmatprep.subr.mxu0 0.0
        %310 = vmatpush1.msra.mxu0 0.0
        %311 = vmatprep.subr.mxu0 0.0
        %312 = vmatpush1.msra.mxu0 0.0
        %313 = vmatprep.subr.mxu0 0.0
        %314 = vmatpush1.msra.mxu0 0.0
        %315 = vmatprep.subr.mxu0 0.0
        %316 = vmatpush1.msra.mxu0 0.0
        %317 = vmatprep.subr.mxu0 0.0
        %318 = vmatpush1.msra.mxu0 0.0
        %319 = vmatprep.subr.mxu0 0.0
        %320 = vmatpush1.msra.mxu0 0.0
        %321 = vmatprep.subr.mxu0 0.0
        %322 = vmatpush1.msra.mxu0 0.0
        %323 = vmatprep.mubr.f32.mxu0 0.0
        %324 = vmatmul.mubr.f32.gmra.mrb[0].mxu0 %v220
        %v325 = vpop.f32.mrb[0].mxu0
        %v326 = vadd.f32 %v257, %v325
        %v327 = vpop.f32.mrb[0].mxu0
        %328 = vmatprep.mubr.f32.mxu0 0.0
        %329 = vmatmul.mubr.f32.gmra.mrb[0].mxu0 %v221
        %v330 = vpop.f32.mrb[0].mxu0
        %v331 = vadd.f32 %v257, %v330
        %v332 = vpop.f32.mrb[0].mxu0
        %333 = vmatprep.mubr.f32.mxu0 0.0
        %334 = vmatmul.mubr.f32.gmra.mrb[0].mxu0 %v222
        %v335 = vpop.f32.mrb[0].mxu0
        %v336 = vadd.f32 %v257, %v335
        %v337 = vpop.f32.mrb[0].mxu0
        %338 = vmatprep.mubr.f32.mxu0 0.0
        %339 = vmatmul.mubr.f32.gmra.mrb[0].mxu0 %v223
        %v340 = vpop.f32.mrb[0].mxu0
        %v341 = vadd.f32 %v257, %v340
        %v342 = vpop.f32.mrb[0].mxu0
        %343 = vmatprep.mubr.f32.mxu0 0.0
        %344 = vmatmul.mubr.f32.gmra.mrb[0].mxu0 %v224
        %v345 = vpop.f32.mrb[0].mxu0
        %v346 = vadd.f32 %v257, %v345
        %v347 = vpop.f32.mrb[0].mxu0
        %348 = vmatprep.mubr.f32.mxu0 0.0
        %349 = vmatmul.mubr.f32.gmra.mrb[0].mxu0 %v225
        %v350 = vpop.f32.mrb[0].mxu0
        %v351 = vadd.f32 %v257, %v350
        %v352 = vpop.f32.mrb[0].mxu0
        %353 = vmatprep.mubr.f32.mxu0 0.0
        %354 = vmatmul.mubr.f32.gmra.mrb[0].mxu0 %v226
        %v355 = vpop.f32.mrb[0].mxu0
        %v356 = vadd.f32 %v257, %v355
        %v357 = vpop.f32.mrb[0].mxu0
        %358 = vmatprep.mubr.f32.mxu0 0.0
        %359 = vmatmul.mubr.f32.gmra.mrb[0].mxu0 %v227
        %v360 = vpop.f32.mrb[0].mxu0
        %v361 = vadd.f32 %v257, %v360
        %v362 = vpop.f32.mrb[0].mxu0
        %363 = vmatprep.mubr.f32.mxu0 0.0
        %364 = vmatmul.mubr.f32.gmra.mrb[0].mxu0 %v228
        %v365 = vpop.f32.mrb[0].mxu0
        %v366 = vadd.f32 %v257, %v365
        %v367 = vpop.f32.mrb[0].mxu0
        %368 = vmatprep.mubr.f32.mxu0 0.0
        %369 = vmatmul.mubr.f32.gmra.mrb[0].mxu0 %v229
        %v370 = vpop.f32.mrb[0].mxu0
        %v371 = vadd.f32 %v257, %v370
        %v372 = vpop.f32.mrb[0].mxu0
        %373 = vmatprep.mubr.f32.mxu0 0.0
        %374 = vmatmul.mubr.f32.gmra.mrb[0].mxu0 %v230
        %v375 = vpop.f32.mrb[0].mxu0
        %v376 = vadd.f32 %v257, %v375
        %v377 = vpop.f32.mrb[0].mxu0
        %378 = vmatprep.mubr.f32.mxu0 0.0
        %379 = vmatmul.mubr.f32.gmra.mrb[0].mxu0 %v231
        %v380 = vpop.f32.mrb[0].mxu0
        %v381 = vadd.f32 %v257, %v380
        %v382 = vpop.f32.mrb[0].mxu0
        %383 = vmatprep.mubr.f32.mxu0 0.0
        %384 = vmatmul.mubr.f32.gmra.mrb[0].mxu0 %v232
        %v385 = vpop.f32.mrb[0].mxu0
        %v386 = vadd.f32 %v257, %v385
        %v387 = vpop.f32.mrb[0].mxu0
        %388 = vmatprep.mubr.f32.mxu0 0.0
        %389 = vmatmul.mubr.f32.gmra.mrb[0].mxu0 %v233
        %v390 = vpop.f32.mrb[0].mxu0
        %v391 = vadd.f32 %v257, %v390
        %v392 = vpop.f32.mrb[0].mxu0
        %393 = vmatprep.mubr.f32.mxu0 0.0
        %394 = vmatmul.mubr.f32.gmra.mrb[0].mxu0 %v234
        %v395 = vpop.f32.mrb[0].mxu0
        %v396 = vadd.f32 %v257, %v395
        %v397 = vpop.f32.mrb[0].mxu0
        %398 = vmatprep.mubr.f32.mxu0 0.0
        %399 = vmatmul.mubr.f32.gmra.mrb[0].mxu0 %v235
        %v400 = vpop.f32.mrb[0].mxu0
        %v401 = vadd.f32 %v257, %v400
        %v402 = vpop.f32.mrb[0].mxu0
        %403 = vdwg.mxu0
        %s404 = scalar_lea.vmem [#allocation5], 128
        %v405 = vld [vmem:[%s404] sm:$0xff]
        %v406 = vld [vmem:[%s404 + $0x8] sm:$0xff]
        %v407 = vld [vmem:[%s404 + $0x10] sm:$0xff]
        %v408 = vld [vmem:[%s404 + $0x18] sm:$0xff]
        %v409 = vld [vmem:[%s404 + $0x20] sm:$0xff]
        %v410 = vld [vmem:[%s404 + $0x28] sm:$0xff]
        %v411 = vld [vmem:[%s404 + $0x30] sm:$0xff]
        %v412 = vld [vmem:[%s404 + $0x38] sm:$0xff]
        %v413 = vld [vmem:[%s404 + $0x40] sm:$0xff]
        %v414 = vld [vmem:[%s404 + $0x48] sm:$0xff]
        %v415 = vld [vmem:[%s404 + $0x50] sm:$0xff]
        %v416 = vld [vmem:[%s404 + $0x58] sm:$0xff]
        %v417 = vld [vmem:[%s404 + $0x60] sm:$0xff]
        %v418 = vld [vmem:[%s404 + $0x68] sm:$0xff]
        %v419 = vld [vmem:[%s404 + $0x70] sm:$0xff]
        %v420 = vld [vmem:[%s404 + $0x78] sm:$0xff]
        %s421 = scalar_lea.vmem [#allocation7], 1
        %v422 = vld [vmem:[%s421] sm:$0x1]
        %v424 = vlaneseq
        %v425 = vshrl.u32 %v424, 7
        %v426 = vsub.s32 0, %v425
        %v427 = vrot.slane %v422, %v426
        %429 = vmatprep.subr.mxu0 0.0
        %430 = vmatpush1.msra.mxu0 %v405
        %431 = vmatprep.subr.mxu0 0.0
        %432 = vmatpush1.msra.mxu0 %v406
        %433 = vmatprep.subr.mxu0 0.0
        %434 = vmatpush1.msra.mxu0 %v407
        %435 = vmatprep.subr.mxu0 0.0
        %436 = vmatpush1.msra.mxu0 %v408
        %437 = vmatprep.subr.mxu0 0.0
        %438 = vmatpush1.msra.mxu0 %v409
        %439 = vmatprep.subr.mxu0 0.0
        %440 = vmatpush1.msra.mxu0 %v410
        %441 = vmatprep.subr.mxu0 0.0
        %442 = vmatpush1.msra.mxu0 %v411
        %443 = vmatprep.subr.mxu0 0.0
        %444 = vmatpush1.msra.mxu0 %v412
        %445 = vmatprep.subr.mxu0 0.0
        %446 = vmatpush1.msra.mxu0 %v413
        %447 = vmatprep.subr.mxu0 0.0
        %448 = vmatpush1.msra.mxu0 %v414
        %449 = vmatprep.subr.mxu0 0.0
        %450 = vmatpush1.msra.mxu0 %v415
        %451 = vmatprep.subr.mxu0 0.0
        %452 = vmatpush1.msra.mxu0 %v416
        %453 = vmatprep.subr.mxu0 0.0
        %454 = vmatpush1.msra.mxu0 %v417
        %455 = vmatprep.subr.mxu0 0.0
        %456 = vmatpush1.msra.mxu0 %v418
        %457 = vmatprep.subr.mxu0 0.0
        %458 = vmatpush1.msra.mxu0 %v419
        %459 = vmatprep.subr.mxu0 0.0
        %460 = vmatpush1.msra.mxu0 %v420
        %461 = vmatprep.subr.mxu0 0.0
        %462 = vmatpush1.msra.mxu0 0.0
        %463 = vmatprep.subr.mxu0 0.0
        %464 = vmatpush1.msra.mxu0 0.0
        %465 = vmatprep.subr.mxu0 0.0
        %466 = vmatpush1.msra.mxu0 0.0
        %467 = vmatprep.subr.mxu0 0.0
        %468 = vmatpush1.msra.mxu0 0.0
        %469 = vmatprep.subr.mxu0 0.0
        %470 = vmatpush1.msra.mxu0 0.0
        %471 = vmatprep.subr.mxu0 0.0
        %472 = vmatpush1.msra.mxu0 0.0
        %473 = vmatprep.subr.mxu0 0.0
        %474 = vmatpush1.msra.mxu0 0.0
        %475 = vmatprep.subr.mxu0 0.0
        %476 = vmatpush1.msra.mxu0 0.0
        %477 = vmatprep.subr.mxu0 0.0
        %478 = vmatpush1.msra.mxu0 0.0
        %479 = vmatprep.subr.mxu0 0.0
        %480 = vmatpush1.msra.mxu0 0.0
        %481 = vmatprep.subr.mxu0 0.0
        %482 = vmatpush1.msra.mxu0 0.0
        %483 = vmatprep.subr.mxu0 0.0
        %484 = vmatpush1.msra.mxu0 0.0
        %485 = vmatprep.subr.mxu0 0.0
        %486 = vmatpush1.msra.mxu0 0.0
        %487 = vmatprep.subr.mxu0 0.0
        %488 = vmatpush1.msra.mxu0 0.0
        %489 = vmatprep.subr.mxu0 0.0
        %490 = vmatpush1.msra.mxu0 0.0
        %491 = vmatprep.subr.mxu0 0.0
        %492 = vmatpush1.msra.mxu0 0.0
        %493 = vmatprep.mubr.f32.mxu0 0.0
        %494 = vmatmul.mubr.f32.gmra.mrb[0].mxu0 %v326
        %v495 = vpop.f32.mrb[0].mxu0
        %v496 = vadd.f32 %v427, %v495
        %v497 = vpop.f32.mrb[0].mxu0
        %498 = vmatprep.mubr.f32.mxu0 0.0
        %499 = vmatmul.mubr.f32.gmra.mrb[0].mxu0 %v331
        %v500 = vpop.f32.mrb[0].mxu0
        %v501 = vadd.f32 %v427, %v500
        %v502 = vpop.f32.mrb[0].mxu0
        %503 = vmatprep.mubr.f32.mxu0 0.0
        %504 = vmatmul.mubr.f32.gmra.mrb[0].mxu0 %v336
        %v505 = vpop.f32.mrb[0].mxu0
        %v506 = vadd.f32 %v427, %v505
        %v507 = vpop.f32.mrb[0].mxu0
        %508 = vmatprep.mubr.f32.mxu0 0.0
        %509 = vmatmul.mubr.f32.gmra.mrb[0].mxu0 %v341
        %v510 = vpop.f32.mrb[0].mxu0
        %v511 = vadd.f32 %v427, %v510
        %v512 = vpop.f32.mrb[0].mxu0
        %513 = vmatprep.mubr.f32.mxu0 0.0
        %514 = vmatmul.mubr.f32.gmra.mrb[0].mxu0 %v346
        %v515 = vpop.f32.mrb[0].mxu0
        %v516 = vadd.f32 %v427, %v515
        %v517 = vpop.f32.mrb[0].mxu0
        %518 = vmatprep.mubr.f32.mxu0 0.0
        %519 = vmatmul.mubr.f32.gmra.mrb[0].mxu0 %v351
        %v520 = vpop.f32.mrb[0].mxu0
        %v521 = vadd.f32 %v427, %v520
        %v522 = vpop.f32.mrb[0].mxu0
        %523 = vmatprep.mubr.f32.mxu0 0.0
        %524 = vmatmul.mubr.f32.gmra.mrb[0].mxu0 %v356
        %v525 = vpop.f32.mrb[0].mxu0
        %v526 = vadd.f32 %v427, %v525
        %v527 = vpop.f32.mrb[0].mxu0
        %528 = vmatprep.mubr.f32.mxu0 0.0
        %529 = vmatmul.mubr.f32.gmra.mrb[0].mxu0 %v361
        %v530 = vpop.f32.mrb[0].mxu0
        %v531 = vadd.f32 %v427, %v530
        %v532 = vpop.f32.mrb[0].mxu0
        %533 = vmatprep.mubr.f32.mxu0 0.0
        %534 = vmatmul.mubr.f32.gmra.mrb[0].mxu0 %v366
        %v535 = vpop.f32.mrb[0].mxu0
        %v536 = vadd.f32 %v427, %v535
        %v537 = vpop.f32.mrb[0].mxu0
        %538 = vmatprep.mubr.f32.mxu0 0.0
        %539 = vmatmul.mubr.f32.gmra.mrb[0].mxu0 %v371
        %v540 = vpop.f32.mrb[0].mxu0
        %v541 = vadd.f32 %v427, %v540
        %v542 = vpop.f32.mrb[0].mxu0
        %543 = vmatprep.mubr.f32.mxu0 0.0
        %544 = vmatmul.mubr.f32.gmra.mrb[0].mxu0 %v376
        %v545 = vpop.f32.mrb[0].mxu0
        %v546 = vadd.f32 %v427, %v545
        %v547 = vpop.f32.mrb[0].mxu0
        %548 = vmatprep.mubr.f32.mxu0 0.0
        %549 = vmatmul.mubr.f32.gmra.mrb[0].mxu0 %v381
        %v550 = vpop.f32.mrb[0].mxu0
        %v551 = vadd.f32 %v427, %v550
        %v552 = vpop.f32.mrb[0].mxu0
        %553 = vmatprep.mubr.f32.mxu0 0.0
        %554 = vmatmul.mubr.f32.gmra.mrb[0].mxu0 %v386
        %v555 = vpop.f32.mrb[0].mxu0
        %v556 = vadd.f32 %v427, %v555
        %v557 = vpop.f32.mrb[0].mxu0
        %558 = vmatprep.mubr.f32.mxu0 0.0
        %559 = vmatmul.mubr.f32.gmra.mrb[0].mxu0 %v391
        %v560 = vpop.f32.mrb[0].mxu0
        %v561 = vadd.f32 %v427, %v560
        %v562 = vpop.f32.mrb[0].mxu0
        %563 = vmatprep.mubr.f32.mxu0 0.0
        %564 = vmatmul.mubr.f32.gmra.mrb[0].mxu0 %v396
        %v565 = vpop.f32.mrb[0].mxu0
        %v566 = vadd.f32 %v427, %v565
        %v567 = vpop.f32.mrb[0].mxu0
        %568 = vmatprep.mubr.f32.mxu0 0.0
        %569 = vmatmul.mubr.f32.gmra.mrb[0].mxu0 %v401
        %v570 = vpop.f32.mrb[0].mxu0
        %v571 = vadd.f32 %v427, %v570
        %v572 = vpop.f32.mrb[0].mxu0
        %573 = vdwg.mxu0
        %v574 = vmax.f32 %v496, 0.0
        %v575 = vmax.f32 %v501, 0.0
        %v576 = vmax.f32 %v506, 0.0
        %v577 = vmax.f32 %v511, 0.0
        %v578 = vmax.f32 %v516, 0.0
        %v579 = vmax.f32 %v521, 0.0
        %v580 = vmax.f32 %v526, 0.0
        %v581 = vmax.f32 %v531, 0.0
        %v582 = vmax.f32 %v536, 0.0
        %v583 = vmax.f32 %v541, 0.0
        %v584 = vmax.f32 %v546, 0.0
        %v585 = vmax.f32 %v551, 0.0
        %v586 = vmax.f32 %v556, 0.0
        %v587 = vmax.f32 %v561, 0.0
        %v588 = vmax.f32 %v566, 0.0
        %v589 = vmax.f32 %v571, 0.0
        %v590 = vadd.f32 %v326, %v574
        %v591 = vadd.f32 %v331, %v575
        %v592 = vadd.f32 %v336, %v576
        %v593 = vadd.f32 %v341, %v577
        %v594 = vadd.f32 %v346, %v578
        %v595 = vadd.f32 %v351, %v579
        %v596 = vadd.f32 %v356, %v580
        %v597 = vadd.f32 %v361, %v581
        %v598 = vadd.f32 %v366, %v582
        %v599 = vadd.f32 %v371, %v583
        %v600 = vadd.f32 %v376, %v584
        %v601 = vadd.f32 %v381, %v585
        %v602 = vadd.f32 %v386, %v586
        %v603 = vadd.f32 %v391, %v587
        %v604 = vadd.f32 %v396, %v588
        %v605 = vadd.f32 %v401, %v589
        %s606 = scalar_lea.vmem [#allocation5], 256
        %v607 = vld [vmem:[%s606] sm:$0xff]
        %v608 = vld [vmem:[%s606 + $0x8] sm:$0xff]
        %v609 = vld [vmem:[%s606 + $0x10] sm:$0xff]
        %v610 = vld [vmem:[%s606 + $0x18] sm:$0xff]
        %v611 = vld [vmem:[%s606 + $0x20] sm:$0xff]
        %v612 = vld [vmem:[%s606 + $0x28] sm:$0xff]
        %v613 = vld [vmem:[%s606 + $0x30] sm:$0xff]
        %v614 = vld [vmem:[%s606 + $0x38] sm:$0xff]
        %v615 = vld [vmem:[%s606 + $0x40] sm:$0xff]
        %v616 = vld [vmem:[%s606 + $0x48] sm:$0xff]
        %v617 = vld [vmem:[%s606 + $0x50] sm:$0xff]
        %v618 = vld [vmem:[%s606 + $0x58] sm:$0xff]
        %v619 = vld [vmem:[%s606 + $0x60] sm:$0xff]
        %v620 = vld [vmem:[%s606 + $0x68] sm:$0xff]
        %v621 = vld [vmem:[%s606 + $0x70] sm:$0xff]
        %v622 = vld [vmem:[%s606 + $0x78] sm:$0xff]
        %s623 = scalar_lea.vmem [#allocation7], 2
        %v624 = vld [vmem:[%s623] sm:$0x1]
        %v626 = vlaneseq
        %v627 = vshrl.u32 %v626, 7
        %v628 = vsub.s32 0, %v627
        %v629 = vrot.slane %v624, %v628
        %631 = vmatprep.subr.mxu0 0.0
        %632 = vmatpush1.msra.mxu0 %v607
        %633 = vmatprep.subr.mxu0 0.0
        %634 = vmatpush1.msra.mxu0 %v608
        %635 = vmatprep.subr.mxu0 0.0
        %636 = vmatpush1.msra.mxu0 %v609
        %637 = vmatprep.subr.mxu0 0.0
        %638 = vmatpush1.msra.mxu0 %v610
        %639 = vmatprep.subr.mxu0 0.0
        %640 = vmatpush1.msra.mxu0 %v611
        %641 = vmatprep.subr.mxu0 0.0
        %642 = vmatpush1.msra.mxu0 %v612
        %643 = vmatprep.subr.mxu0 0.0
        %644 = vmatpush1.msra.mxu0 %v613
        %645 = vmatprep.subr.mxu0 0.0
        %646 = vmatpush1.msra.mxu0 %v614
        %647 = vmatprep.subr.mxu0 0.0
        %648 = vmatpush1.msra.mxu0 %v615
        %649 = vmatprep.subr.mxu0 0.0
        %650 = vmatpush1.msra.mxu0 %v616
        %651 = vmatprep.subr.mxu0 0.0
        %652 = vmatpush1.msra.mxu0 %v617
        %653 = vmatprep.subr.mxu0 0.0
        %654 = vmatpush1.msra.mxu0 %v618
        %655 = vmatprep.subr.mxu0 0.0
        %656 = vmatpush1.msra.mxu0 %v619
        %657 = vmatprep.subr.mxu0 0.0
        %658 = vmatpush1.msra.mxu0 %v620
        %659 = vmatprep.subr.mxu0 0.0
        %660 = vmatpush1.msra.mxu0 %v621
        %661 = vmatprep.subr.mxu0 0.0
        %662 = vmatpush1.msra.mxu0 %v622
        %663 = vmatprep.subr.mxu0 0.0
        %664 = vmatpush1.msra.mxu0 0.0
        %665 = vmatprep.subr.mxu0 0.0
        %666 = vmatpush1.msra.mxu0 0.0
        %667 = vmatprep.subr.mxu0 0.0
        %668 = vmatpush1.msra.mxu0 0.0
        %669 = vmatprep.subr.mxu0 0.0
        %670 = vmatpush1.msra.mxu0 0.0
        %671 = vmatprep.subr.mxu0 0.0
        %672 = vmatpush1.msra.mxu0 0.0
        %673 = vmatprep.subr.mxu0 0.0
        %674 = vmatpush1.msra.mxu0 0.0
        %675 = vmatprep.subr.mxu0 0.0
        %676 = vmatpush1.msra.mxu0 0.0
        %677 = vmatprep.subr.mxu0 0.0
        %678 = vmatpush1.msra.mxu0 0.0
        %679 = vmatprep.subr.mxu0 0.0
        %680 = vmatpush1.msra.mxu0 0.0
        %681 = vmatprep.subr.mxu0 0.0
        %682 = vmatpush1.msra.mxu0 0.0
        %683 = vmatprep.subr.mxu0 0.0
        %684 = vmatpush1.msra.mxu0 0.0
        %685 = vmatprep.subr.mxu0 0.0
        %686 = vmatpush1.msra.mxu0 0.0
        %687 = vmatprep.subr.mxu0 0.0
        %688 = vmatpush1.msra.mxu0 0.0
        %689 = vmatprep.subr.mxu0 0.0
        %690 = vmatpush1.msra.mxu0 0.0
        %691 = vmatprep.subr.mxu0 0.0
        %692 = vmatpush1.msra.mxu0 0.0
        %693 = vmatprep.subr.mxu0 0.0
        %694 = vmatpush1.msra.mxu0 0.0
        %695 = vmatprep.mubr.f32.mxu0 0.0
        %696 = vmatmul.mubr.f32.gmra.mrb[0].mxu0 %v590
        %v697 = vpop.f32.mrb[0].mxu0
        %v698 = vadd.f32 %v629, %v697
        %v699 = vpop.f32.mrb[0].mxu0
        %700 = vmatprep.mubr.f32.mxu0 0.0
        %701 = vmatmul.mubr.f32.gmra.mrb[0].mxu0 %v591
        %v702 = vpop.f32.mrb[0].mxu0
        %v703 = vadd.f32 %v629, %v702
        %v704 = vpop.f32.mrb[0].mxu0
        %705 = vmatprep.mubr.f32.mxu0 0.0
        %706 = vmatmul.mubr.f32.gmra.mrb[0].mxu0 %v592
        %v707 = vpop.f32.mrb[0].mxu0
        %v708 = vadd.f32 %v629, %v707
        %v709 = vpop.f32.mrb[0].mxu0
        %710 = vmatprep.mubr.f32.mxu0 0.0
        %711 = vmatmul.mubr.f32.gmra.mrb[0].mxu0 %v593
        %v712 = vpop.f32.mrb[0].mxu0
        %v713 = vadd.f32 %v629, %v712
        %v714 = vpop.f32.mrb[0].mxu0
        %715 = vmatprep.mubr.f32.mxu0 0.0
        %716 = vmatmul.mubr.f32.gmra.mrb[0].mxu0 %v594
        %v717 = vpop.f32.mrb[0].mxu0
        %v718 = vadd.f32 %v629, %v717
        %v719 = vpop.f32.mrb[0].mxu0
        %720 = vmatprep.mubr.f32.mxu0 0.0
        %721 = vmatmul.mubr.f32.gmra.mrb[0].mxu0 %v595
        %v722 = vpop.f32.mrb[0].mxu0
        %v723 = vadd.f32 %v629, %v722
        %v724 = vpop.f32.mrb[0].mxu0
        %725 = vmatprep.mubr.f32.mxu0 0.0
        %726 = vmatmul.mubr.f32.gmra.mrb[0].mxu0 %v596
        %v727 = vpop.f32.mrb[0].mxu0
        %v728 = vadd.f32 %v629, %v727
        %v729 = vpop.f32.mrb[0].mxu0
        %730 = vmatprep.mubr.f32.mxu0 0.0
        %731 = vmatmul.mubr.f32.gmra.mrb[0].mxu0 %v597
        %v732 = vpop.f32.mrb[0].mxu0
        %v733 = vadd.f32 %v629, %v732
        %v734 = vpop.f32.mrb[0].mxu0
        %735 = vmatprep.mubr.f32.mxu0 0.0
        %736 = vmatmul.mubr.f32.gmra.mrb[0].mxu0 %v598
        %v737 = vpop.f32.mrb[0].mxu0
        %v738 = vadd.f32 %v629, %v737
        %v739 = vpop.f32.mrb[0].mxu0
        %740 = vmatprep.mubr.f32.mxu0 0.0
        %741 = vmatmul.mubr.f32.gmra.mrb[0].mxu0 %v599
        %v742 = vpop.f32.mrb[0].mxu0
        %v743 = vadd.f32 %v629, %v742
        %v744 = vpop.f32.mrb[0].mxu0
        %745 = vmatprep.mubr.f32.mxu0 0.0
        %746 = vmatmul.mubr.f32.gmra.mrb[0].mxu0 %v600
        %v747 = vpop.f32.mrb[0].mxu0
        %v748 = vadd.f32 %v629, %v747
        %v749 = vpop.f32.mrb[0].mxu0
        %750 = vmatprep.mubr.f32.mxu0 0.0
        %751 = vmatmul.mubr.f32.gmra.mrb[0].mxu0 %v601
        %v752 = vpop.f32.mrb[0].mxu0
        %v753 = vadd.f32 %v629, %v752
        %v754 = vpop.f32.mrb[0].mxu0
        %755 = vmatprep.mubr.f32.mxu0 0.0
        %756 = vmatmul.mubr.f32.gmra.mrb[0].mxu0 %v602
        %v757 = vpop.f32.mrb[0].mxu0
        %v758 = vadd.f32 %v629, %v757
        %v759 = vpop.f32.mrb[0].mxu0
        %760 = vmatprep.mubr.f32.mxu0 0.0
        %761 = vmatmul.mubr.f32.gmra.mrb[0].mxu0 %v603
        %v762 = vpop.f32.mrb[0].mxu0
        %v763 = vadd.f32 %v629, %v762
        %v764 = vpop.f32.mrb[0].mxu0
        %765 = vmatprep.mubr.f32.mxu0 0.0
        %766 = vmatmul.mubr.f32.gmra.mrb[0].mxu0 %v604
        %v767 = vpop.f32.mrb[0].mxu0
        %v768 = vadd.f32 %v629, %v767
        %v769 = vpop.f32.mrb[0].mxu0
        %770 = vmatprep.mubr.f32.mxu0 0.0
        %771 = vmatmul.mubr.f32.gmra.mrb[0].mxu0 %v605
        %v772 = vpop.f32.mrb[0].mxu0
        %v773 = vadd.f32 %v629, %v772
        %v774 = vpop.f32.mrb[0].mxu0
        %775 = vdwg.mxu0
        %v776 = vmax.f32 %v698, 0.0
        %v777 = vmax.f32 %v703, 0.0
        %v778 = vmax.f32 %v708, 0.0
        %v779 = vmax.f32 %v713, 0.0
        %v780 = vmax.f32 %v718, 0.0
        %v781 = vmax.f32 %v723, 0.0
        %v782 = vmax.f32 %v728, 0.0
        %v783 = vmax.f32 %v733, 0.0
        %v784 = vmax.f32 %v738, 0.0
        %v785 = vmax.f32 %v743, 0.0
        %v786 = vmax.f32 %v748, 0.0
        %v787 = vmax.f32 %v753, 0.0
        %v788 = vmax.f32 %v758, 0.0
        %v789 = vmax.f32 %v763, 0.0
        %v790 = vmax.f32 %v768, 0.0
        %v791 = vmax.f32 %v773, 0.0
        %v792 = vadd.f32 %v590, %v776
        %v793 = vadd.f32 %v591, %v777
        %v794 = vadd.f32 %v592, %v778
        %v795 = vadd.f32 %v593, %v779
        %v796 = vadd.f32 %v594, %v780
        %v797 = vadd.f32 %v595, %v781
        %v798 = vadd.f32 %v596, %v782
        %v799 = vadd.f32 %v597, %v783
        %v800 = vadd.f32 %v598, %v784
        %v801 = vadd.f32 %v599, %v785
        %v802 = vadd.f32 %v600, %v786
        %v803 = vadd.f32 %v601, %v787
        %v804 = vadd.f32 %v602, %v788
        %v805 = vadd.f32 %v603, %v789
        %v806 = vadd.f32 %v604, %v790
        %v807 = vadd.f32 %v605, %v791
        %s808 = scalar_lea.vmem [#allocation5], 384
        %v809 = vld [vmem:[%s808] sm:$0xff]
        %v810 = vld [vmem:[%s808 + $0x8] sm:$0xff]
        %v811 = vld [vmem:[%s808 + $0x10] sm:$0xff]
        %v812 = vld [vmem:[%s808 + $0x18] sm:$0xff]
        %v813 = vld [vmem:[%s808 + $0x20] sm:$0xff]
        %v814 = vld [vmem:[%s808 + $0x28] sm:$0xff]
        %v815 = vld [vmem:[%s808 + $0x30] sm:$0xff]
        %v816 = vld [vmem:[%s808 + $0x38] sm:$0xff]
        %v817 = vld [vmem:[%s808 + $0x40] sm:$0xff]
        %v818 = vld [vmem:[%s808 + $0x48] sm:$0xff]
        %v819 = vld [vmem:[%s808 + $0x50] sm:$0xff]
        %v820 = vld [vmem:[%s808 + $0x58] sm:$0xff]
        %v821 = vld [vmem:[%s808 + $0x60] sm:$0xff]
        %v822 = vld [vmem:[%s808 + $0x68] sm:$0xff]
        %v823 = vld [vmem:[%s808 + $0x70] sm:$0xff]
        %v824 = vld [vmem:[%s808 + $0x78] sm:$0xff]
        %s825 = scalar_lea.vmem [#allocation7], 3
        %v826 = vld [vmem:[%s825] sm:$0x1]
        %v828 = vlaneseq
        %v829 = vshrl.u32 %v828, 7
        %v830 = vsub.s32 0, %v829
        %v831 = vrot.slane %v826, %v830
        %833 = vmatprep.subr.mxu0 0.0
        %834 = vmatpush1.msra.mxu0 %v809
        %835 = vmatprep.subr.mxu0 0.0
        %836 = vmatpush1.msra.mxu0 %v810
        %837 = vmatprep.subr.mxu0 0.0
        %838 = vmatpush1.msra.mxu0 %v811
        %839 = vmatprep.subr.mxu0 0.0
        %840 = vmatpush1.msra.mxu0 %v812
        %841 = vmatprep.subr.mxu0 0.0
        %842 = vmatpush1.msra.mxu0 %v813
        %843 = vmatprep.subr.mxu0 0.0
        %844 = vmatpush1.msra.mxu0 %v814
        %845 = vmatprep.subr.mxu0 0.0
        %846 = vmatpush1.msra.mxu0 %v815
        %847 = vmatprep.subr.mxu0 0.0
        %848 = vmatpush1.msra.mxu0 %v816
        %849 = vmatprep.subr.mxu0 0.0
        %850 = vmatpush1.msra.mxu0 %v817
        %851 = vmatprep.subr.mxu0 0.0
        %852 = vmatpush1.msra.mxu0 %v818
        %853 = vmatprep.subr.mxu0 0.0
        %854 = vmatpush1.msra.mxu0 %v819
        %855 = vmatprep.subr.mxu0 0.0
        %856 = vmatpush1.msra.mxu0 %v820
        %857 = vmatprep.subr.mxu0 0.0
        %858 = vmatpush1.msra.mxu0 %v821
        %859 = vmatprep.subr.mxu0 0.0
        %860 = vmatpush1.msra.mxu0 %v822
        %861 = vmatprep.subr.mxu0 0.0
        %862 = vmatpush1.msra.mxu0 %v823
        %863 = vmatprep.subr.mxu0 0.0
        %864 = vmatpush1.msra.mxu0 %v824
        %865 = vmatprep.subr.mxu0 0.0
        %866 = vmatpush1.msra.mxu0 0.0
        %867 = vmatprep.subr.mxu0 0.0
        %868 = vmatpush1.msra.mxu0 0.0
        %869 = vmatprep.subr.mxu0 0.0
        %870 = vmatpush1.msra.mxu0 0.0
        %871 = vmatprep.subr.mxu0 0.0
        %872 = vmatpush1.msra.mxu0 0.0
        %873 = vmatprep.subr.mxu0 0.0
        %874 = vmatpush1.msra.mxu0 0.0
        %875 = vmatprep.subr.mxu0 0.0
        %876 = vmatpush1.msra.mxu0 0.0
        %877 = vmatprep.subr.mxu0 0.0
        %878 = vmatpush1.msra.mxu0 0.0
        %879 = vmatprep.subr.mxu0 0.0
        %880 = vmatpush1.msra.mxu0 0.0
        %881 = vmatprep.subr.mxu0 0.0
        %882 = vmatpush1.msra.mxu0 0.0
        %883 = vmatprep.subr.mxu0 0.0
        %884 = vmatpush1.msra.mxu0 0.0
        %885 = vmatprep.subr.mxu0 0.0
        %886 = vmatpush1.msra.mxu0 0.0
        %887 = vmatprep.subr.mxu0 0.0
        %888 = vmatpush1.msra.mxu0 0.0
        %889 = vmatprep.subr.mxu0 0.0
        %890 = vmatpush1.msra.mxu0 0.0
        %891 = vmatprep.subr.mxu0 0.0
        %892 = vmatpush1.msra.mxu0 0.0
        %893 = vmatprep.subr.mxu0 0.0
        %894 = vmatpush1.msra.mxu0 0.0
        %895 = vmatprep.subr.mxu0 0.0
        %896 = vmatpush1.msra.mxu0 0.0
        %897 = vmatprep.mubr.f32.mxu0 0.0
        %898 = vmatmul.mubr.f32.gmra.mrb[0].mxu0 %v792
        %v899 = vpop.f32.mrb[0].mxu0
        %v900 = vadd.f32 %v831, %v899
        %v901 = vpop.f32.mrb[0].mxu0
        %902 = vmatprep.mubr.f32.mxu0 0.0
        %903 = vmatmul.mubr.f32.gmra.mrb[0].mxu0 %v793
        %v904 = vpop.f32.mrb[0].mxu0
        %v905 = vadd.f32 %v831, %v904
        %v906 = vpop.f32.mrb[0].mxu0
        %907 = vmatprep.mubr.f32.mxu0 0.0
        %908 = vmatmul.mubr.f32.gmra.mrb[0].mxu0 %v794
        %v909 = vpop.f32.mrb[0].mxu0
        %v910 = vadd.f32 %v831, %v909
        %v911 = vpop.f32.mrb[0].mxu0
        %912 = vmatprep.mubr.f32.mxu0 0.0
        %913 = vmatmul.mubr.f32.gmra.mrb[0].mxu0 %v795
        %v914 = vpop.f32.mrb[0].mxu0
        %v915 = vadd.f32 %v831, %v914
        %v916 = vpop.f32.mrb[0].mxu0
        %917 = vmatprep.mubr.f32.mxu0 0.0
        %918 = vmatmul.mubr.f32.gmra.mrb[0].mxu0 %v796
        %v919 = vpop.f32.mrb[0].mxu0
        %v920 = vadd.f32 %v831, %v919
        %v921 = vpop.f32.mrb[0].mxu0
        %922 = vmatprep.mubr.f32.mxu0 0.0
        %923 = vmatmul.mubr.f32.gmra.mrb[0].mxu0 %v797
        %v924 = vpop.f32.mrb[0].mxu0
        %v925 = vadd.f32 %v831, %v924
        %v926 = vpop.f32.mrb[0].mxu0
        %927 = vmatprep.mubr.f32.mxu0 0.0
        %928 = vmatmul.mubr.f32.gmra.mrb[0].mxu0 %v798
        %v929 = vpop.f32.mrb[0].mxu0
        %v930 = vadd.f32 %v831, %v929
        %v931 = vpop.f32.mrb[0].mxu0
        %932 = vmatprep.mubr.f32.mxu0 0.0
        %933 = vmatmul.mubr.f32.gmra.mrb[0].mxu0 %v799
        %v934 = vpop.f32.mrb[0].mxu0
        %v935 = vadd.f32 %v831, %v934
        %v936 = vpop.f32.mrb[0].mxu0
        %937 = vmatprep.mubr.f32.mxu0 0.0
        %938 = vmatmul.mubr.f32.gmra.mrb[0].mxu0 %v800
        %v939 = vpop.f32.mrb[0].mxu0
        %v940 = vadd.f32 %v831, %v939
        %v941 = vpop.f32.mrb[0].mxu0
        %942 = vmatprep.mubr.f32.mxu0 0.0
        %943 = vmatmul.mubr.f32.gmra.mrb[0].mxu0 %v801
        %v944 = vpop.f32.mrb[0].mxu0
        %v945 = vadd.f32 %v831, %v944
        %v946 = vpop.f32.mrb[0].mxu0
        %947 = vmatprep.mubr.f32.mxu0 0.0
        %948 = vmatmul.mubr.f32.gmra.mrb[0].mxu0 %v802
        %v949 = vpop.f32.mrb[0].mxu0
        %v950 = vadd.f32 %v831, %v949
        %v951 = vpop.f32.mrb[0].mxu0
        %952 = vmatprep.mubr.f32.mxu0 0.0
        %953 = vmatmul.mubr.f32.gmra.mrb[0].mxu0 %v803
        %v954 = vpop.f32.mrb[0].mxu0
        %v955 = vadd.f32 %v831, %v954
        %v956 = vpop.f32.mrb[0].mxu0
        %957 = vmatprep.mubr.f32.mxu0 0.0
        %958 = vmatmul.mubr.f32.gmra.mrb[0].mxu0 %v804
        %v959 = vpop.f32.mrb[0].mxu0
        %v960 = vadd.f32 %v831, %v959
        %v961 = vpop.f32.mrb[0].mxu0
        %962 = vmatprep.mubr.f32.mxu0 0.0
        %963 = vmatmul.mubr.f32.gmra.mrb[0].mxu0 %v805
        %v964 = vpop.f32.mrb[0].mxu0
        %v965 = vadd.f32 %v831, %v964
        %v966 = vpop.f32.mrb[0].mxu0
        %967 = vmatprep.mubr.f32.mxu0 0.0
        %968 = vmatmul.mubr.f32.gmra.mrb[0].mxu0 %v806
        %v969 = vpop.f32.mrb[0].mxu0
        %v970 = vadd.f32 %v831, %v969
        %v971 = vpop.f32.mrb[0].mxu0
        %972 = vmatprep.mubr.f32.mxu0 0.0
        %973 = vmatmul.mubr.f32.gmra.mrb[0].mxu0 %v807
        %v974 = vpop.f32.mrb[0].mxu0
        %v975 = vadd.f32 %v831, %v974
        %v976 = vpop.f32.mrb[0].mxu0
        %977 = vdwg.mxu0
        %978 = vst [vmem:[%s217] sm:$0xff] %v900
        %979 = vst [vmem:[%s217 + $0x8] sm:$0xff] %v905
        %980 = vst [vmem:[%s217 + $0x10] sm:$0xff] %v910
        %981 = vst [vmem:[%s217 + $0x18] sm:$0xff] %v915
        %982 = vst [vmem:[%s217 + $0x20] sm:$0xff] %v920
        %983 = vst [vmem:[%s217 + $0x28] sm:$0xff] %v925
        %984 = vst [vmem:[%s217 + $0x30] sm:$0xff] %v930
        %985 = vst [vmem:[%s217 + $0x38] sm:$0xff] %v935
        %986 = vst [vmem:[%s217 + $0x40] sm:$0xff] %v940
        %987 = vst [vmem:[%s217 + $0x48] sm:$0xff] %v945
        %988 = vst [vmem:[%s217 + $0x50] sm:$0xff] %v950
        %989 = vst [vmem:[%s217 + $0x58] sm:$0xff] %v955
        %990 = vst [vmem:[%s217 + $0x60] sm:$0xff] %v960
        %991 = vst [vmem:[%s217 + $0x68] sm:$0xff] %v965
        %992 = vst [vmem:[%s217 + $0x70] sm:$0xff] %v970
        %993 = vst [vmem:[%s217 + $0x78] sm:$0xff] %v975
        %s994 = sand.u32 %s97, 1
        %s995 = scalar_lea.sflag [#allocation4], %s994
        %s996 = sand.u32 %s97, 1
        %s997 = smul.addr %s996, 128
        %s998 = scalar_lea.vmem [#allocation8], %s997
        // Predicated region
        $region45: #{tpu_custom_call.1} parent=31 // pred_check
          %p999 = pneg %p107
        $region46: #{tpu_custom_call.1} parent=31 // pred_check_branch
          %1001 = sbr.rel (%p999) target = $region48
        $region47: #{tpu_custom_call.1} parent=31 // pred_region
          %s1002 = smul.u32 16, %s21
          %s1004 = ssub.s32 2048, 2048
          %1005 = vsyncadd %s995, %s1004
          %s1006 = smul.addr %s1002, 128
          %s1007 = scalar_lea.hbm %s3, %s1006
          %s1008 = sshll.u32 %s998, 4
          %s1009 = int_to_ptr.vmem [resolvable:$true] %s1008
          %1014 = dma.vmem_to_hbm [thread:$0]  %s1009, 2048, %s1007, %s995, 128, 128, 8
        $region48: #{tpu_custom_call.1} parent=31 // pred_fallthru
          _
      $region32: #{tpu_custom_call.1} parent=5 // pred_fallthru
        _
      %p1015 = scmp.le.s32.totalorder 2, %s16
      // Predicated region
      $region49: #{tpu_custom_call.1} parent=5 // pred_check
        %p1016 = pneg %p1015
      $region50: #{tpu_custom_call.1} parent=5 // pred_check_branch
        %1018 = sbr.rel (%p1016) target = $region52
      $region51: #{tpu_custom_call.1} parent=5 // pred_region
        %s1019 = ssub.s32 %s16, 2
        // Predicated region
        $region53: #{tpu_custom_call.1} parent=51 // pred_check
          %p1020 = pneg %p113
        $region54: #{tpu_custom_call.1} parent=51 // pred_check_branch
          %1022 = sbr.rel (%p1020) target = $region56
        $region55: #{tpu_custom_call.1} parent=51 // pred_region
          %s1023 = sand.u32 %s98, 1
          %s1024 = scalar_lea.sflag [#allocation4], %s1023
          %s1025 = sand.u32 %s98, 1
          %s1026 = smul.addr %s1025, 128
          %s1027 = scalar_lea.vmem [#allocation8], %s1026
          %1028 = dma.done %s1024, 2048
        $region56: #{tpu_custom_call.1} parent=51 // pred_fallthru
          _
      $region52: #{tpu_custom_call.1} parent=5 // pred_fallthru
        _
    $region6: #{tpu_custom_call.1} parent=1 // loop_footer
      %s20 = sadd.s32 1, %s16
    $region7: #{tpu_custom_call.1} parent=1 // loop_footer_branch
      %15 = sbr.rel target = $region3
    $region8: #{tpu_custom_call.1} parent=1 // loop_exit
      _
    %1029 = vsyncpa [#allocation3], 1
    %s1030 = scalar_lea.sflag [#allocation3], 1
    %1031 = vsyncpa %s1030, 1
    %1032 = vsyncpa [#allocation6], 1
    %1033 = vsyncpa [#allocation4], 1
    %s1034 = scalar_lea.sflag [#allocation4], 1
    %1035 = vsyncpa %s1034, 1

</llo_original>
